<compile_context>
chip_gen: v6e
topology: v6e:2x2x1
jax: 0.10.0
libtpu: 0.0.40
codegen_flags: <defaults>
</compile_context>

<pallas_src>
import math
from functools import partial

import numpy as np
import jax
import jax.numpy as jnp
from jax import lax
from jax.experimental import pallas as pl
from jax.experimental.pallas import tpu as pltpu

# ---- hyper-parameters (DynamicFilter.__init__ defaults, except size=16 to match H,W) ----
DIM = 64
EXPANSION_RATIO = 2
REWEIGHT_RATIO = 0.25
NUM_FILTERS = 4
F_PAD = 8                          # filters axis zero-padded for sublane-aligned in-kernel matmul
SIZE = 16                          # spatial size; filter_size = SIZE // 2 + 1
MED = int(EXPANSION_RATIO * DIM)   # med_channels
HID = int(REWEIGHT_RATIO * DIM)    # reweight MLP hidden
WF = SIZE // 2 + 1                 # rfft half-spectrum width
HWF = SIZE * WF                    # flattened half-spectrum length (144 = 18*8, sublane aligned)

# TODO(synk): weight_resize=True path (bicubic resize of complex_weights) not implemented;
# the default weight_resize=False forward path is covered.
# TODO(synk): in a full network, fuse the lane-dense batch (de)grouping reshape/transpose with
# the producer/consumer layers instead of doing a standalone HBM pass per DynamicFilter.


def build_fft_mats(H, W):
    """Exact ortho rfft2 / irfft2 operators as real matrices (built from delta bases)."""
    Wf = W // 2 + 1
    eye_sp = np.eye(H * W, dtype=np.float64).reshape(H * W, H, W)
    fwd = np.fft.rfft2(eye_sp, axes=(1, 2), norm='ortho').reshape(H * W, H * Wf)
    fwd_r = np.ascontiguousarray(fwd.real.T).astype(np.float32)             # (H*Wf, H*W)
    fwd_i = np.ascontiguousarray(fwd.imag.T).astype(np.float32)
    eye_fr = np.eye(H * Wf, dtype=np.complex128).reshape(H * Wf, H, Wf)
    inv_r = np.fft.irfft2(eye_fr, s=(H, W), axes=(1, 2),
                          norm='ortho').reshape(H * Wf, H * W).T
    inv_i = np.fft.irfft2(1j * eye_fr, s=(H, W), axes=(1, 2),
                          norm='ortho').reshape(H * Wf, H * W).T
    return (fwd_r, fwd_i,
            np.ascontiguousarray(inv_r).astype(np.float32),                 # (H*W, H*Wf)
            np.ascontiguousarray(inv_i).astype(np.float32))


def _block_diag(m, g):
    """Block-diagonal replication of a 2-D weight matrix g times."""
    if g == 1:
        return m
    a, b = m.shape
    out = jnp.zeros((g * a, g * b), m.dtype)
    for i in range(g):
        out = out.at[i * a:(i + 1) * a, i * b:(i + 1) * b].set(m)
    return out


@partial(jax.jit, static_argnames=("act1_scale", "act1_bias",
                                   "reweight_scale", "reweight_bias"))
def dynamic_filter_forward(x, w1, wr1, wr2, cw, w2, fwd_r, fwd_i, inv_r, inv_i, *,
                           act1_scale=1.0, act1_bias=0.0,
                           reweight_scale=1.0, reweight_bias=0.0):
    B, H, W, dim = x.shape
    assert H == SIZE and W == SIZE and dim == DIM
    HW = H * W
    x = x.astype(jnp.float32)

    # ---- keep every block 128 lanes wide: always pack G=2 images per group (pad odd B) ----
    G = 2
    B_pad = ((B + G - 1) // G) * G
    if B_pad != B:
        x = jnp.concatenate([x, jnp.zeros((B_pad - B, H, W, dim), x.dtype)], axis=0)
    BG = B_pad // G

    # ---- NB batch-groups per grid step (amortize per-step cost); keep grid >= 2 if possible ----
    candidates = [nb for nb in (4, 2, 1) if BG % nb == 0]
    preferred = [nb for nb in candidates if BG // nb >= 2]   # feed both v7x TensorCores
    NB = (preferred or candidates)[0]
    grid = (BG // NB,)

    # ---- routing MLP hoisted to XLA: M=1-per-image matmuls are poor MXU shapes in-kernel ----
    xm = x.reshape(B_pad, HW, dim).mean(axis=1)                             # (B_pad, dim)
    h = reweight_scale * jnp.maximum(xm @ wr1, 0.0) ** 2 + reweight_bias    # StarReLU
    r = jax.nn.softmax((h @ wr2).reshape(B_pad, NUM_FILTERS, MED), axis=1)  # (B_pad, F, MED)
    r_g = (r.reshape(BG, G, NUM_FILTERS, MED).transpose(0, 2, 1, 3)
            .reshape(BG, NUM_FILTERS, G * MED))
    # zero-pad filters axis 4 -> 8 so the in-kernel cw@r matmul has a sublane-aligned K
    r_g = jnp.concatenate(
        [r_g, jnp.zeros((BG, F_PAD - NUM_FILTERS, G * MED), r_g.dtype)],
        axis=1).astype(jnp.float32)                                         # (BG, F_PAD, G*MED)

    # ---- lane-dense batch grouping of the input; bf16 halves DMA and feeds the MXU ----
    x_g = (x.reshape(BG, G, HW, dim).transpose(0, 2, 1, 3)
            .reshape(BG, HW, G * dim).astype(jnp.bfloat16))

    # ---- operator prep: stacked fwd DFT, split inverse DFT, block-diag pwconvs ----
    w1_bd = _block_diag(w1, G).astype(jnp.bfloat16)                         # (G*dim, G*MED)
    w2_bd = _block_diag(w2, G).astype(jnp.bfloat16)                         # (G*MED, G*dim)
    fwd_st = jnp.concatenate([fwd_r, fwd_i], axis=0).astype(jnp.bfloat16)   # (2*HWF, HW)
    inv_r_m = inv_r.astype(jnp.bfloat16)                                    # (HW, HWF)
    inv_i_m = inv_i.astype(jnp.bfloat16)                                    # (HW, HWF)
    cw_st = jnp.concatenate([cw[..., 0].reshape(HWF, NUM_FILTERS),
                             cw[..., 1].reshape(HWF, NUM_FILTERS)], axis=0)  # (2*HWF, F)
    cw_st = jnp.concatenate(
        [cw_st, jnp.zeros((2 * HWF, F_PAD - NUM_FILTERS), cw_st.dtype)],
        axis=1).astype(jnp.float32)                                          # (2*HWF, F_PAD)

    s1 = float(act1_scale)
    b1 = float(act1_bias)

    def kernel(x_ref, r_ref, w1_ref, w2_ref, cw_ref, fwd_ref, invr_ref, invi_ref, o_ref):
        def compute(nb):
            # ---- pwconv1 (block-diag over the G packed batches) + StarReLU ----
            u = jnp.dot(x_ref[nb], w1_ref[...],
                        preferred_element_type=jnp.float32)                 # (HW, G*MED)
            u = jnp.maximum(u, 0.0) ** 2
            if s1 != 1.0:                                                   # static: folds away
                u = s1 * u                                                  # at the defaults
            if b1 != 0.0:
                u = u + b1

            # ---- rfft2 (ortho), stacked real/imag operator: one matmul -> [yr; yi] ----
            y = jnp.dot(fwd_ref[...], u.astype(jnp.bfloat16),
                        preferred_element_type=jnp.float32)                 # (2*HWF, G*MED)

            # ---- dynamic filter weight = complex_weights @ routing : one small MXU matmul ----
            w = jnp.dot(cw_ref[...], r_ref[nb],
                        preferred_element_type=jnp.float32)                 # (2*HWF, G*MED)

            yr, yi = y[:HWF], y[HWF:]   # 144-row splits are 8-sublane aligned (cheap views)
            wr, wi = w[:HWF], w[HWF:]

            # ---- complex multiply; bf16 casts fused into MXU operand prep (no concat copy) ----
            zr = (yr * wr - yi * wi).astype(jnp.bfloat16)                   # (HWF, G*MED)
            zi = (yr * wi + yi * wr).astype(jnp.bfloat16)

            # ---- reassociated back end: irfft2(z) @ W2 == Ir@(zr@W2) + Ii@(zi@W2) ----
            pr = jnp.dot(zr, w2_ref[...], preferred_element_type=jnp.float32)  # (HWF, G*dim)
            pi = jnp.dot(zi, w2_ref[...], preferred_element_type=jnp.float32)
            o_ref[nb] = (
                jnp.dot(invr_ref[...], pr.astype(jnp.bfloat16),
                        preferred_element_type=jnp.float32)
                + jnp.dot(invi_ref[...], pi.astype(jnp.bfloat16),
                          preferred_element_type=jnp.float32))              # (HW, G*dim)

        if NB == 1:
            compute(0)
        else:
            def body(nb, carry):
                compute(nb)
                return carry
            lax.fori_loop(0, NB, body, 0, unroll=True)

    out = pl.pallas_call(
        kernel,
        out_shape=jax.ShapeDtypeStruct((BG, HW, G * dim), jnp.float32),
        grid=grid,
        in_specs=[
            pl.BlockSpec((NB, HW, G * dim), lambda g: (g, 0, 0)),           # x (grouped)
            pl.BlockSpec((NB, F_PAD, G * MED), lambda g: (g, 0, 0)),        # routing weights
            pl.BlockSpec((G * dim, G * MED), lambda g: (0, 0)),             # pwconv1 (blkdiag)
            pl.BlockSpec((G * MED, G * dim), lambda g: (0, 0)),             # pwconv2 (blkdiag)
            pl.BlockSpec((2 * HWF, F_PAD), lambda g: (0, 0)),               # complex_weights
            pl.BlockSpec((2 * HWF, HW), lambda g: (0, 0)),                  # stacked rfft2
            pl.BlockSpec((HW, HWF), lambda g: (0, 0)),                      # irfft2 (real part)
            pl.BlockSpec((HW, HWF), lambda g: (0, 0)),                      # irfft2 (imag part)
        ],
        out_specs=pl.BlockSpec((NB, HW, G * dim), lambda g: (g, 0, 0)),
        compiler_params=pltpu.CompilerParams(dimension_semantics=("parallel",)),
    )(x_g, r_g, w1_bd, w2_bd, cw_st, fwd_st, inv_r_m, inv_i_m)

    # undo the lane-dense batch grouping and drop any batch padding
    out = (out.reshape(BG, HW, G, dim).transpose(0, 2, 1, 3)
              .reshape(B_pad, H, W, dim))
    return out[:B]


def reference_numpy(x, w1, wr1, wr2, cw, w2, act1_scale=1.0, act1_bias=0.0,
                    reweight_scale=1.0, reweight_bias=0.0):
    """Pure numpy reference reproducing DynamicFilter.forward semantics (float64)."""
    x = np.asarray(x, np.float64)
    B, H, W, dim = x.shape
    xm = x.mean(axis=(1, 2))                                                # (B, dim)
    h = reweight_scale * np.maximum(xm @ np.asarray(wr1, np.float64), 0.0) ** 2 + reweight_bias
    r = (h @ np.asarray(wr2, np.float64)).reshape(B, NUM_FILTERS, MED)
    r = np.exp(r - r.max(axis=1, keepdims=True))
    r = r / r.sum(axis=1, keepdims=True)                                    # softmax(dim=1)
    u = (act1_scale * np.maximum(x.reshape(B, H * W, dim) @ np.asarray(w1, np.float64), 0.0) ** 2
         + act1_bias)
    Y = np.fft.rfft2(u.reshape(B, H, W, MED), axes=(1, 2), norm='ortho')
    cw = np.asarray(cw, np.float64)
    cw_c = cw[..., 0] + 1j * cw[..., 1]                                     # (H, Wf, F)
    weight = np.einsum('bfc,hwf->bhwc', r.astype(np.complex128), cw_c)
    v = np.fft.irfft2(Y * weight, s=(H, W), axes=(1, 2), norm='ortho')
    out = v.reshape(B, H * W, MED) @ np.asarray(w2, np.float64)
    return out.reshape(B, H, W, dim)


if __name__ == "__main__":
    key = jax.random.PRNGKey(0)
    ks = jax.random.split(key, 6)
    # deterministic "synthetic checkpoint" (shapes match the module's __init__)
    w1 = jax.random.normal(ks[0], (DIM, MED), jnp.float32) / math.sqrt(DIM)             # pwconv1
    w2 = jax.random.normal(ks[1], (MED, DIM), jnp.float32) / math.sqrt(MED)             # pwconv2
    wr1 = jax.random.normal(ks[2], (DIM, HID), jnp.float32) / math.sqrt(DIM)            # reweight fc1
    wr2 = jax.random.normal(ks[3], (HID, NUM_FILTERS * MED), jnp.float32) / math.sqrt(HID)  # reweight fc2
    cw = jax.random.normal(ks[4], (SIZE, WF, NUM_FILTERS, 2), jnp.float32) * 0.02       # complex_weights

    fwd_r, fwd_i, inv_r, inv_i = (jnp.asarray(m) for m in build_fft_mats(SIZE, SIZE))

    # cases: even B (single-step path), odd B (batch-padding path),
    #        larger B with non-default StarReLU params (NB=2 per step, >=2 grid steps).
    cases = [
        (2, dict(act1_scale=1.0, act1_bias=0.0, reweight_scale=1.0, reweight_bias=0.0)),
        (3, dict(act1_scale=1.0, act1_bias=0.0, reweight_scale=1.0, reweight_bias=0.0)),
        (8, dict(act1_scale=0.9, act1_bias=0.05, reweight_scale=1.1, reweight_bias=-0.02)),
    ]
    for B, params in cases:
        xk = jax.random.fold_in(ks[5], B)
        x = jax.random.normal(xk, (B, SIZE, SIZE, DIM), jnp.float32)

        out = dynamic_filter_forward(x, w1, wr1, wr2, cw, w2,
                                     fwd_r, fwd_i, inv_r, inv_i, **params)
        out = jax.block_until_ready(out)

        ref = reference_numpy(np.asarray(x), np.asarray(w1), np.asarray(wr1),
                              np.asarray(wr2), np.asarray(cw), np.asarray(w2), **params)
        err = float(np.max(np.abs(np.asarray(out, np.float64) - ref)) /
                    (np.max(np.abs(ref)) + 1e-12))
        if err > 5e-2:
            raise AssertionError(f"B={B}: kernel mismatch vs reference: rel-max-err={err:.3e}")

    print("KERNEL_OK")
</pallas_src>

<mosaic_0001>
module attributes {stable_mosaic.version = 11 : i64} {
  func.func @kernel(%arg0: i32, %arg1: memref<1x256x128xbf16, #tpu.memory_space<vmem>>, %arg2: memref<1x8x256xf32, #tpu.memory_space<vmem>>, %arg3: memref<128x256xbf16, #tpu.memory_space<vmem>>, %arg4: memref<256x128xbf16, #tpu.memory_space<vmem>>, %arg5: memref<288x8xf32, #tpu.memory_space<vmem>>, %arg6: memref<288x256xbf16, #tpu.memory_space<vmem>>, %arg7: memref<256x144xbf16, #tpu.memory_space<vmem>>, %arg8: memref<256x144xbf16, #tpu.memory_space<vmem>>, %arg9: memref<1x256x128xf32, #tpu.memory_space<vmem>>) attributes {dimension_semantics = [#tpu.dimension_semantics<parallel>], iteration_bounds = array<i64: 1>, scalar_prefetch = 0 : i64, scratch_operands = 0 : i64, tpu.core_type = #tpu.core_type<tc>, window_params = [{transform_indices = @transform_0, window_bounds = array<i64: 1, 256, 128>}, {transform_indices = @transform_1, window_bounds = array<i64: 1, 8, 256>}, {pipeline_mode = #tpu.pipeline_mode<synchronous>, transform_indices = @transform_2, window_bounds = array<i64: 128, 256>}, {pipeline_mode = #tpu.pipeline_mode<synchronous>, transform_indices = @transform_3, window_bounds = array<i64: 256, 128>}, {pipeline_mode = #tpu.pipeline_mode<synchronous>, transform_indices = @transform_4, window_bounds = array<i64: 288, 8>}, {pipeline_mode = #tpu.pipeline_mode<synchronous>, transform_indices = @transform_5, window_bounds = array<i64: 288, 256>}, {pipeline_mode = #tpu.pipeline_mode<synchronous>, transform_indices = @transform_6, window_bounds = array<i64: 256, 144>}, {pipeline_mode = #tpu.pipeline_mode<synchronous>, transform_indices = @transform_7, window_bounds = array<i64: 256, 144>}, {transform_indices = @transform_8, window_bounds = array<i64: 1, 256, 128>}]} {
    %c0 = arith.constant 0 : index
    %c0_0 = arith.constant 0 : index
    %c0_1 = arith.constant 0 : index
    %0 = vector.load %arg1[%c0, %c0_0, %c0_1] : memref<1x256x128xbf16, #tpu.memory_space<vmem>>, vector<1x256x128xbf16>
    %1 = vector.shape_cast %0 : vector<1x256x128xbf16> to vector<256x128xbf16>
    %c0_2 = arith.constant 0 : index
    %c0_3 = arith.constant 0 : index
    %2 = vector.load %arg3[%c0_2, %c0_3] : memref<128x256xbf16, #tpu.memory_space<vmem>>, vector<128x256xbf16>
    %cst = arith.constant dense<0.000000e+00> : vector<256x256xf32>
    %3 = tpu.matmul %1, %2, %cst {dimension_numbers = #tpu.dot_dimension_numbers<[1], [0], [0], [1], [0, 0, 1, 1], [], []>} : vector<256x128xbf16>, vector<128x256xbf16>, vector<256x256xf32> -> vector<256x256xf32>
    %cst_4 = arith.constant 0.000000e+00 : f32
    %4 = vector.broadcast %cst_4 : f32 to vector<256x256xf32>
    %5 = arith.maximumf %3, %4 : vector<256x256xf32>
    %6 = arith.mulf %5, %5 : vector<256x256xf32>
    %c0_5 = arith.constant 0 : index
    %c0_6 = arith.constant 0 : index
    %7 = vector.load %arg6[%c0_5, %c0_6] : memref<288x256xbf16, #tpu.memory_space<vmem>>, vector<288x256xbf16>
    %8 = arith.truncf %6 : vector<256x256xf32> to vector<256x256xbf16>
    %cst_7 = arith.constant dense<0.000000e+00> : vector<288x256xf32>
    %9 = tpu.matmul %7, %8, %cst_7 {dimension_numbers = #tpu.dot_dimension_numbers<[1], [0], [0], [1], [0, 0, 1, 1], [], []>} : vector<288x256xbf16>, vector<256x256xbf16>, vector<288x256xf32> -> vector<288x256xf32>
    %c0_8 = arith.constant 0 : index
    %c0_9 = arith.constant 0 : index
    %10 = vector.load %arg5[%c0_8, %c0_9] : memref<288x8xf32, #tpu.memory_space<vmem>>, vector<288x8xf32>
    %c0_10 = arith.constant 0 : index
    %c0_11 = arith.constant 0 : index
    %c0_12 = arith.constant 0 : index
    %11 = vector.load %arg2[%c0_10, %c0_11, %c0_12] : memref<1x8x256xf32, #tpu.memory_space<vmem>>, vector<1x8x256xf32>
    %12 = vector.shape_cast %11 : vector<1x8x256xf32> to vector<8x256xf32>
    %cst_13 = arith.constant dense<0.000000e+00> : vector<288x256xf32>
    %13 = tpu.matmul %10, %12, %cst_13 {dimension_numbers = #tpu.dot_dimension_numbers<[1], [0], [0], [1], [0, 0, 1, 1], [], []>} : vector<288x8xf32>, vector<8x256xf32>, vector<288x256xf32> -> vector<288x256xf32>
    %14 = vector.extract_strided_slice %9 {offsets = [0, 0], sizes = [144, 256], strides = [1, 1]} : vector<288x256xf32> to vector<144x256xf32>
    %15 = vector.extract_strided_slice %9 {offsets = [144, 0], sizes = [144, 256], strides = [1, 1]} : vector<288x256xf32> to vector<144x256xf32>
    %16 = vector.extract_strided_slice %13 {offsets = [0, 0], sizes = [144, 256], strides = [1, 1]} : vector<288x256xf32> to vector<144x256xf32>
    %17 = vector.extract_strided_slice %13 {offsets = [144, 0], sizes = [144, 256], strides = [1, 1]} : vector<288x256xf32> to vector<144x256xf32>
    %18 = arith.mulf %14, %16 : vector<144x256xf32>
    %19 = arith.mulf %15, %17 : vector<144x256xf32>
    %20 = arith.subf %18, %19 : vector<144x256xf32>
    %21 = arith.truncf %20 : vector<144x256xf32> to vector<144x256xbf16>
    %22 = arith.mulf %14, %17 : vector<144x256xf32>
    %23 = arith.mulf %15, %16 : vector<144x256xf32>
    %24 = arith.addf %22, %23 : vector<144x256xf32>
    %25 = arith.truncf %24 : vector<144x256xf32> to vector<144x256xbf16>
    %c0_14 = arith.constant 0 : index
    %c0_15 = arith.constant 0 : index
    %26 = vector.load %arg4[%c0_14, %c0_15] : memref<256x128xbf16, #tpu.memory_space<vmem>>, vector<256x128xbf16>
    %cst_16 = arith.constant dense<0.000000e+00> : vector<144x128xf32>
    %27 = tpu.matmul %21, %26, %cst_16 {dimension_numbers = #tpu.dot_dimension_numbers<[1], [0], [0], [1], [0, 0, 1, 1], [], []>} : vector<144x256xbf16>, vector<256x128xbf16>, vector<144x128xf32> -> vector<144x128xf32>
    %c0_17 = arith.constant 0 : index
    %c0_18 = arith.constant 0 : index
    %28 = vector.load %arg4[%c0_17, %c0_18] : memref<256x128xbf16, #tpu.memory_space<vmem>>, vector<256x128xbf16>
    %cst_19 = arith.constant dense<0.000000e+00> : vector<144x128xf32>
    %29 = tpu.matmul %25, %28, %cst_19 {dimension_numbers = #tpu.dot_dimension_numbers<[1], [0], [0], [1], [0, 0, 1, 1], [], []>} : vector<144x256xbf16>, vector<256x128xbf16>, vector<144x128xf32> -> vector<144x128xf32>
    %c0_20 = arith.constant 0 : index
    %c0_21 = arith.constant 0 : index
    %30 = vector.load %arg7[%c0_20, %c0_21] : memref<256x144xbf16, #tpu.memory_space<vmem>>, vector<256x144xbf16>
    %31 = arith.truncf %27 : vector<144x128xf32> to vector<144x128xbf16>
    %cst_22 = arith.constant dense<0.000000e+00> : vector<256x128xf32>
    %32 = tpu.matmul %30, %31, %cst_22 {dimension_numbers = #tpu.dot_dimension_numbers<[1], [0], [0], [1], [0, 0, 1, 1], [], []>} : vector<256x144xbf16>, vector<144x128xbf16>, vector<256x128xf32> -> vector<256x128xf32>
    %c0_23 = arith.constant 0 : index
    %c0_24 = arith.constant 0 : index
    %33 = vector.load %arg8[%c0_23, %c0_24] : memref<256x144xbf16, #tpu.memory_space<vmem>>, vector<256x144xbf16>
    %34 = arith.truncf %29 : vector<144x128xf32> to vector<144x128xbf16>
    %cst_25 = arith.constant dense<0.000000e+00> : vector<256x128xf32>
    %35 = tpu.matmul %33, %34, %cst_25 {dimension_numbers = #tpu.dot_dimension_numbers<[1], [0], [0], [1], [0, 0, 1, 1], [], []>} : vector<256x144xbf16>, vector<144x128xbf16>, vector<256x128xf32> -> vector<256x128xf32>
    %36 = arith.addf %32, %35 : vector<256x128xf32>
    %c0_26 = arith.constant 0 : index
    %c0_27 = arith.constant 0 : index
    %c0_28 = arith.constant 0 : index
    %37 = vector.load %arg9[%c0_26, %c0_27, %c0_28] : memref<1x256x128xf32, #tpu.memory_space<vmem>>, vector<1x256x128xf32>
    %38 = vector.shape_cast %37 : vector<1x256x128xf32> to vector<256x128xf32>
    %39 = vector.shape_cast %36 : vector<256x128xf32> to vector<1x256x128xf32>
    tpu.vector_store %arg9[%c0_26, %c0_27, %c0_28], %39 {strides = array<i32>} : memref<1x256x128xf32, #tpu.memory_space<vmem>>, vector<1x256x128xf32>,
    return
  }
  func.func @transform_0(%arg0: i32) -> (i32, i32, i32) {
    %c0_i32 = arith.constant 0 : i32
    %c0_i32_0 = arith.constant 0 : i32
    %c0_i32_1 = arith.constant 0 : i32
    return %arg0, %c0_i32, %c0_i32_0 : i32, i32, i32
  }
  func.func @transform_1(%arg0: i32) -> (i32, i32, i32) {
    %c0_i32 = arith.constant 0 : i32
    %c0_i32_0 = arith.constant 0 : i32
    %c0_i32_1 = arith.constant 0 : i32
    return %arg0, %c0_i32, %c0_i32_0 : i32, i32, i32
  }
  func.func @transform_2(%arg0: i32) -> (i32, i32) {
    %c0_i32 = arith.constant 0 : i32
    %c0_i32_0 = arith.constant 0 : i32
    %c0_i32_1 = arith.constant 0 : i32
    return %c0_i32, %c0_i32_0 : i32, i32
  }
  func.func @transform_3(%arg0: i32) -> (i32, i32) {
    %c0_i32 = arith.constant 0 : i32
    %c0_i32_0 = arith.constant 0 : i32
    %c0_i32_1 = arith.constant 0 : i32
    return %c0_i32, %c0_i32_0 : i32, i32
  }
  func.func @transform_4(%arg0: i32) -> (i32, i32) {
    %c0_i32 = arith.constant 0 : i32
    %c0_i32_0 = arith.constant 0 : i32
    %c0_i32_1 = arith.constant 0 : i32
    return %c0_i32, %c0_i32_0 : i32, i32
  }
  func.func @transform_5(%arg0: i32) -> (i32, i32) {
    %c0_i32 = arith.constant 0 : i32
    %c0_i32_0 = arith.constant 0 : i32
    %c0_i32_1 = arith.constant 0 : i32
    return %c0_i32, %c0_i32_0 : i32, i32
  }
  func.func @transform_6(%arg0: i32) -> (i32, i32) {
    %c0_i32 = arith.constant 0 : i32
    %c0_i32_0 = arith.constant 0 : i32
    %c0_i32_1 = arith.constant 0 : i32
    return %c0_i32, %c0_i32_0 : i32, i32
  }
  func.func @transform_7(%arg0: i32) -> (i32, i32) {
    %c0_i32 = arith.constant 0 : i32
    %c0_i32_0 = arith.constant 0 : i32
    %c0_i32_1 = arith.constant 0 : i32
    return %c0_i32, %c0_i32_0 : i32, i32
  }
  func.func @transform_8(%arg0: i32) -> (i32, i32, i32) {
    %c0_i32 = arith.constant 0 : i32
    %c0_i32_0 = arith.constant 0 : i32
    %c0_i32_1 = arith.constant 0 : i32
    return %arg0, %c0_i32, %c0_i32_0 : i32, i32, i32
  }
}

</mosaic_0001>

<llo_original>
// kernel: squeeze.2
$region0: #{squeeze.2}
  %s0 = inlined_call_operand.vmem [shape: f32[16,9,4,1], index: 0, kind: input, shape index: {}]
  %s1 = inlined_call_operand.vmem [shape: f32[144,4], index: 1, kind: output, shape index: {}]
  $region1: #{squeeze.2} parent=0
    #allocation0 [shape = 'u8[8192]{0}', space=vmem, size = 0x2000, scoped, tag = 'scoped mem for output reshape']
    %s2 = smov 3
    %v3 = vld [vmem:[%s0] ss:$16 sm:%s2]
    %s4 = smov 12
    %v5 = vld [vmem:[%s0] ss:$16 sm:%s4]
    %vm6 = vcmask 1043458
    %v7 = vsel %vm6, %v5, %v3
    %vm8 = vcmask 72704
    %9 = vst.msk [vmem:[#allocation0] sm:$0xf] %vm8, %v7
    %s10 = scalar_lea.vmem %s0, 14
    %s11 = smov 3
    %v12 = vld [vmem:[%s10] ss:$16 sm:%s11]
    %s13 = scalar_lea.vmem %s0, 14
    %s14 = smov 12
    %v15 = vld [vmem:[%s13] ss:$16 sm:%s14]
    %vm16 = vcmask 1043458
    %v17 = vsel %vm16, %v15, %v12
    %s18 = scalar_lea.vmem %s0, 14
    %s19 = smov 3
    %v20 = vld [vmem:[%s18] ss:$16 sm:%s19]
    %s21 = scalar_lea.vmem %s0, 14
    %s22 = smov 12
    %v23 = vld [vmem:[%s21] ss:$16 sm:%s22]
    %vm24 = vcmask 1043458
    %v25 = vsel %vm24, %v23, %v20
    %vm26 = vcmask 15360
    %v27 = vsel %vm26, %v25, %v17
    %28 = vrot.lane.b32.xlu0 %v27, 126
    %v29 = vpop.permute.xlu0 %28
    %vm30 = vcmask 56320
    %s31 = scalar_lea.vmem [#allocation0], 8
    %32 = vst.msk [vmem:[%s31] sm:$0xf] %vm30, %v29
    %vm33 = vcmask 1048560
    %34 = vst.msk [vmem:[#allocation0] sm:$0xf] %vm33, %v29
    %s35 = scalar_lea.vmem %s0, 13
    %s36 = smov 3
    %v37 = vld [vmem:[%s35] ss:$16 sm:%s36]
    %s38 = scalar_lea.vmem %s0, 13
    %s39 = smov 12
    %v40 = vld [vmem:[%s38] ss:$16 sm:%s39]
    %vm41 = vcmask 1043458
    %v42 = vsel %vm41, %v40, %v37
    %43 = vrot.lane.b32.xlu0 %v42, 117
    %v44 = vpop.permute.xlu0 %43
    %vm45 = vcmask 1032104
    %46 = vst.msk [vmem:[#allocation0] sm:$0xf] %vm45, %v44
    %s47 = scalar_lea.vmem %s0, 12
    %s48 = smov 3
    %v49 = vld [vmem:[%s47] ss:$16 sm:%s48]
    %s50 = scalar_lea.vmem %s0, 12
    %s51 = smov 12
    %v52 = vld [vmem:[%s50] ss:$16 sm:%s51]
    %vm53 = vcmask 1043458
    %v54 = vsel %vm53, %v52, %v49
    %55 = vrot.lane.b32.xlu0 %v54, 108
    %v56 = vpop.permute.xlu0 %55
    %vm57 = vcmask 958304
    %58 = vst.msk [vmem:[#allocation0] sm:$0xf] %vm57, %v56
    %s59 = scalar_lea.vmem %s0, 11
    %s60 = smov 3
    %v61 = vld [vmem:[%s59] ss:$16 sm:%s60]
    %s62 = scalar_lea.vmem %s0, 11
    %s63 = smov 12
    %v64 = vld [vmem:[%s62] ss:$16 sm:%s63]
    %vm65 = vcmask 1043458
    %v66 = vsel %vm65, %v64, %v61
    %67 = vrot.lane.b32.xlu0 %v66, 99
    %v68 = vpop.permute.xlu0 %67
    %vm69 = vcmask 884504
    %70 = vst.msk [vmem:[#allocation0] sm:$0xf] %vm69, %v68
    %s71 = scalar_lea.vmem %s0, 10
    %s72 = smov 3
    %v73 = vld [vmem:[%s71] ss:$16 sm:%s72]
    %s74 = scalar_lea.vmem %s0, 10
    %s75 = smov 12
    %v76 = vld [vmem:[%s74] ss:$16 sm:%s75]
    %vm77 = vcmask 1043458
    %v78 = vsel %vm77, %v76, %v73
    %79 = vrot.lane.b32.xlu0 %v78, 90
    %v80 = vpop.permute.xlu0 %79
    %vm81 = vcmask 810704
    %82 = vst.msk [vmem:[#allocation0] sm:$0xf] %vm81, %v80
    %s83 = scalar_lea.vmem %s0, 9
    %s84 = smov 3
    %v85 = vld [vmem:[%s83] ss:$16 sm:%s84]
    %s86 = scalar_lea.vmem %s0, 9
    %s87 = smov 12
    %v88 = vld [vmem:[%s86] ss:$16 sm:%s87]
    %vm89 = vcmask 1043458
    %v90 = vsel %vm89, %v88, %v85
    %91 = vrot.lane.b32.xlu0 %v90, 81
    %v92 = vpop.permute.xlu0 %91
    %vm93 = vcmask 736904
    %94 = vst.msk [vmem:[#allocation0] sm:$0xf] %vm93, %v92
    %s95 = scalar_lea.vmem %s0, 8
    %s96 = smov 3
    %v97 = vld [vmem:[%s95] ss:$16 sm:%s96]
    %s98 = scalar_lea.vmem %s0, 8
    %s99 = smov 12
    %v100 = vld [vmem:[%s98] ss:$16 sm:%s99]
    %vm101 = vcmask 1043458
    %v102 = vsel %vm101, %v100, %v97
    %103 = vrot.lane.b32.xlu0 %v102, 72
    %v104 = vpop.permute.xlu0 %103
    %vm105 = vcmask 663104
    %106 = vst.msk [vmem:[#allocation0] sm:$0xf] %vm105, %v104
    %s107 = scalar_lea.vmem %s0, 7
    %s108 = smov 3
    %v109 = vld [vmem:[%s107] ss:$16 sm:%s108]
    %s110 = scalar_lea.vmem %s0, 7
    %s111 = smov 12
    %v112 = vld [vmem:[%s110] ss:$16 sm:%s111]
    %vm113 = vcmask 1043458
    %v114 = vsel %vm113, %v112, %v109
    %115 = vrot.lane.b32.xlu0 %v114, 63
    %v116 = vpop.permute.xlu0 %115
    %vm117 = vcmask 589304
    %118 = vst.msk [vmem:[#allocation0] sm:$0xf] %vm117, %v116
    %s119 = scalar_lea.vmem %s0, 6
    %s120 = smov 3
    %v121 = vld [vmem:[%s119] ss:$16 sm:%s120]
    %s122 = scalar_lea.vmem %s0, 6
    %s123 = smov 12
    %v124 = vld [vmem:[%s122] ss:$16 sm:%s123]
    %vm125 = vcmask 1043458
    %v126 = vsel %vm125, %v124, %v121
    %127 = vrot.lane.b32.xlu0 %v126, 54
    %v128 = vpop.permute.xlu0 %127
    %vm129 = vcmask 515504
    %130 = vst.msk [vmem:[#allocation0] sm:$0xf] %vm129, %v128
    %s131 = scalar_lea.vmem %s0, 5
    %s132 = smov 3
    %v133 = vld [vmem:[%s131] ss:$16 sm:%s132]
    %s134 = scalar_lea.vmem %s0, 5
    %s135 = smov 12
    %v136 = vld [vmem:[%s134] ss:$16 sm:%s135]
    %vm137 = vcmask 1043458
    %v138 = vsel %vm137, %v136, %v133
    %139 = vrot.lane.b32.xlu0 %v138, 45
    %v140 = vpop.permute.xlu0 %139
    %vm141 = vcmask 441704
    %142 = vst.msk [vmem:[#allocation0] sm:$0xf] %vm141, %v140
    %s143 = scalar_lea.vmem %s0, 4
    %s144 = smov 3
    %v145 = vld [vmem:[%s143] ss:$16 sm:%s144]
    %s146 = scalar_lea.vmem %s0, 4
    %s147 = smov 12
    %v148 = vld [vmem:[%s146] ss:$16 sm:%s147]
    %vm149 = vcmask 1043458
    %v150 = vsel %vm149, %v148, %v145
    %151 = vrot.lane.b32.xlu0 %v150, 36
    %v152 = vpop.permute.xlu0 %151
    %vm153 = vcmask 367904
    %154 = vst.msk [vmem:[#allocation0] sm:$0xf] %vm153, %v152
    %s155 = scalar_lea.vmem %s0, 3
    %s156 = smov 3
    %v157 = vld [vmem:[%s155] ss:$16 sm:%s156]
    %s158 = scalar_lea.vmem %s0, 3
    %s159 = smov 12
    %v160 = vld [vmem:[%s158] ss:$16 sm:%s159]
    %vm161 = vcmask 1043458
    %v162 = vsel %vm161, %v160, %v157
    %163 = vrot.lane.b32.xlu0 %v162, 27
    %v164 = vpop.permute.xlu0 %163
    %vm165 = vcmask 294104
    %166 = vst.msk [vmem:[#allocation0] sm:$0xf] %vm165, %v164
    %s167 = scalar_lea.vmem %s0, 2
    %s168 = smov 3
    %v169 = vld [vmem:[%s167] ss:$16 sm:%s168]
    %s170 = scalar_lea.vmem %s0, 2
    %s171 = smov 12
    %v172 = vld [vmem:[%s170] ss:$16 sm:%s171]
    %vm173 = vcmask 1043458
    %v174 = vsel %vm173, %v172, %v169
    %175 = vrot.lane.b32.xlu0 %v174, 18
    %v176 = vpop.permute.xlu0 %175
    %vm177 = vcmask 220304
    %178 = vst.msk [vmem:[#allocation0] sm:$0xf] %vm177, %v176
    %s179 = scalar_lea.vmem %s0, 1
    %s180 = smov 3
    %v181 = vld [vmem:[%s179] ss:$16 sm:%s180]
    %s182 = scalar_lea.vmem %s0, 1
    %s183 = smov 12
    %v184 = vld [vmem:[%s182] ss:$16 sm:%s183]
    %vm185 = vcmask 1043458
    %v186 = vsel %vm185, %v184, %v181
    %187 = vrot.lane.b32.xlu0 %v186, 9
    %v188 = vpop.permute.xlu0 %187
    %vm189 = vcmask 146504
    %190 = vst.msk [vmem:[#allocation0] sm:$0xf] %vm189, %v188
    %s191 = scalar_lea.vmem %s0, 15
    %s192 = smov 3
    %v193 = vld [vmem:[%s191] ss:$16 sm:%s192]
    %s194 = scalar_lea.vmem %s0, 15
    %s195 = smov 12
    %v196 = vld [vmem:[%s194] ss:$16 sm:%s195]
    %vm197 = vcmask 1043458
    %v198 = vsel %vm197, %v196, %v193
    %199 = vrot.lane.b32.xlu0 %v198, 7
    %v200 = vpop.permute.xlu0 %199
    %vm201 = vcmask 130104
    %s202 = scalar_lea.vmem [#allocation0], 8
    %203 = vst.msk [vmem:[%s202] sm:$0xf] %vm201, %v200
    %s205 = sshll.u32 1, 4
    %s206 = ssub.s32 %s205, 1
    %v208 = vld [vmem:[#allocation0] sm:%s206]
    %s209 = sshll.u32 1, 4
    %s210 = ssub.s32 %s209, 1
    %211 = vst [vmem:[%s1] sm:%s210] %v208
    %s212 = scalar_lea.vmem [#allocation0], 8
    %v213 = vld [vmem:[%s212] sm:%s206]
    %s214 = sshll.u32 1, 4
    %s215 = ssub.s32 %s214, 1
    %s216 = scalar_lea.vmem %s1, 4
    %217 = vst [vmem:[%s216] sm:%s215] %v213

</llo_original>
